<compile_context>
chip_gen: v5e
topology: v5e:2x2
jax: 0.10.0
libtpu: 0.0.40
codegen_flags: <defaults>
</compile_context>

<pallas_src>
import functools

import jax
import jax.numpy as jnp
from jax.experimental import pallas as pl
from jax.experimental.pallas import tpu as pltpu


# --------------------------------------------------------------------------
# tiling helpers
# --------------------------------------------------------------------------
def _round_up(x, m):
    return ((x + m - 1) // m) * m


def _channel_tile(C, align, cap):
    """Aligned channel tile <= min(cap, C); prefers >= 2 tiles (v7x megacore)."""
    if C <= align:
        return C                                    # single full-extent block
    cap = max(align, (cap // align) * align)
    tc = min(cap, (C // align) * align)             # aligned, never exceeds C
    if C >= 2 * align:
        half = _round_up(-(-C // 2), align)         # cdiv(C, 2) rounded up
        tc = min(tc, half)                          # -> at least 2 c-tiles
    return tc


def _largest_divisor_leq(n, cap):
    cap = max(1, min(n, cap))
    for d in range(cap, 0, -1):
        if n % d == 0:
            return d
    return 1


# --------------------------------------------------------------------------
# FAST path kernel: whole (N, TC, HW) slab per grid step, x read once.
# --------------------------------------------------------------------------
def _bn_onepass_kernel(x_ref, w_ref, b_ref, o_ref, mean_ref, var_ref,
                       *, eps, inv_count):
    # x_ref/o_ref: (N, TC, HW)   w_ref/b_ref/mean_ref/var_ref: (TC, 1)
    x = x_ref[...].astype(jnp.float32)                        # (N, TC, HW)
    xs = jnp.sum(x, axis=0)                                   # (TC, HW)  VPU
    qs = jnp.sum(x * x, axis=0)                               # (TC, HW)
    mean = jnp.sum(xs, axis=-1, keepdims=True) * inv_count    # (TC, 1)
    msq = jnp.sum(qs, axis=-1, keepdims=True) * inv_count
    var = jnp.maximum(msq - mean * mean, 0.0)
    inv_std = jax.lax.rsqrt(var + eps)
    scale = w_ref[...] * inv_std                              # (TC, 1)
    shift = b_ref[...] - mean * scale
    o_ref[...] = (x * scale[None] + shift[None]).astype(o_ref.dtype)
    mean_ref[...] = mean
    var_ref[...] = var


# --------------------------------------------------------------------------
# GENERAL path kernel: fused two-phase (stats pass, then normalize pass).
# --------------------------------------------------------------------------
def _bn_twophase_kernel(x_ref, w_ref, b_ref, o_ref, mean_ref, var_ref,
                        sum_acc, sumsq_acc, scale_acc, shift_acc,
                        *, eps, inv_count, hw, tl, acc_w, tn, mask_lanes):
    # x_ref/o_ref: (TN, TC, TL)          w_ref/b_ref: (TC, 1)
    # sum_acc/sumsq_acc: (TC, ACC_W)     scale_acc/shift_acc: (TC, 1)
    phase = pl.program_id(1)
    n = pl.program_id(2)
    l = pl.program_id(3)
    last_n = pl.num_programs(2) - 1
    last_l = pl.num_programs(3) - 1

    is_stats = phase == 0
    is_first = jnp.logical_and(n == 0, l == 0)
    is_last = jnp.logical_and(n == last_n, l == last_l)

    # phase 0, first (n, l) tile of this channel tile: zero the accumulators.
    @pl.when(jnp.logical_and(is_stats, is_first))
    def _init():
        sum_acc[...] = jnp.zeros_like(sum_acc)
        sumsq_acc[...] = jnp.zeros_like(sumsq_acc)

    # phase 0: VPU-only hot loop.  Accumulate static 128-lane slices into
    # (TC, ACC_W) partials; the single cross-lane (XLU) reduce happens only
    # once per channel tile, in _finalize.  Keeps phase 0 DMA-bound on v7x.
    @pl.when(is_stats)
    def _accumulate():
        tc = sum_acc.shape[0]
        acc_s = jnp.zeros((tc, acc_w), jnp.float32)
        acc_q = jnp.zeros((tc, acc_w), jnp.float32)
        if mask_lanes:
            valid = hw - l * tl           # valid lanes in this HW block
            lane = jax.lax.broadcasted_iota(jnp.int32, (1, acc_w), 1)
        for b in range(tn):
            for t in range(tl // acc_w):
                sl = x_ref[b, :, t * acc_w:(t + 1) * acc_w].astype(jnp.float32)
                if mask_lanes:
                    sl = jnp.where(lane < (valid - t * acc_w), sl, 0.0)
                acc_s = acc_s + sl
                acc_q = acc_q + sl * sl
        sum_acc[...] += acc_s
        sumsq_acc[...] += acc_q

    # phase 0, last (n, l) tile: finalize stats, precompute scale/shift.
    @pl.when(jnp.logical_and(is_stats, is_last))
    def _finalize():
        mean = jnp.sum(sum_acc[...], axis=-1, keepdims=True) * inv_count
        msq = jnp.sum(sumsq_acc[...], axis=-1, keepdims=True) * inv_count
        var = jnp.maximum(msq - mean * mean, 0.0)
        inv_std = jax.lax.rsqrt(var + eps)
        scale = w_ref[...] * inv_std
        scale_acc[...] = scale
        shift_acc[...] = b_ref[...] - mean * scale
        mean_ref[...] = mean
        var_ref[...] = var

    # phase 1: normalize with one fused multiply-add per element.
    @pl.when(phase == 1)
    def _normalize():
        x = x_ref[...].astype(jnp.float32)                    # (TN, TC, TL)
        o_ref[...] = (x * scale_acc[...][None]
                      + shift_acc[...][None]).astype(o_ref.dtype)


# --------------------------------------------------------------------------
# wrapper
# --------------------------------------------------------------------------
def batchnorm2d_forward(x, weight, bias, running_mean, running_var,
                        eps=1e-5, momentum=0.1, path=None,
                        block_budget_bytes=2 * 1024 * 1024,
                        tl_cap=4096,
                        vmem_limit_bytes=32 * 1024 * 1024):
    """Training-mode BatchNorm2d forward (matches F.batch_norm(training=True)).

    x: (N, C, H, W).  Returns (out, new_running_mean, new_running_var).
    path: None (auto), "fast" (single-read slab path) or "twopass".
    """
    N, C, H, W = x.shape
    HW = H * W
    L = N * HW

    # Free reshape (row-major NCHW -> (N, C, HW)); no transpose / extra HBM pass.
    x3 = x.reshape(N, C, HW)

    if weight is None:
        weight = jnp.ones((C,), jnp.float32)
    if bias is None:
        bias = jnp.zeros((C,), jnp.float32)
    w2d = weight.reshape(C, 1).astype(jnp.float32)
    b2d = bias.reshape(C, 1).astype(jnp.float32)

    c_align = 16 if x.dtype == jnp.bfloat16 else 8
    itemsize = jnp.dtype(x.dtype).itemsize

    slab_per_channel = N * HW * itemsize
    fast_ok = slab_per_channel * min(C, c_align) <= block_budget_bytes
    use_fast = fast_ok if path is None else (path == "fast")
    if use_fast and not fast_ok:
        raise ValueError("fast path requested but channel slab exceeds budget")

    out_shapes = (
        jax.ShapeDtypeStruct((N, C, HW), x.dtype),
        jax.ShapeDtypeStruct((C, 1), jnp.float32),
        jax.ShapeDtypeStruct((C, 1), jnp.float32),
    )

    def _cparams(sem):
        return pltpu.CompilerParams(dimension_semantics=sem,
                                    vmem_limit_bytes=vmem_limit_bytes)

    if use_fast:
        # ---------------- single-read slab path: 2 HBM passes on x/out ------
        tc_cap = max(1, block_budget_bytes // slab_per_channel)
        TC = _channel_tile(C, c_align, min(tc_cap, 256))
        grid = (pl.cdiv(C, TC),)
        kernel = functools.partial(_bn_onepass_kernel,
                                   eps=float(eps), inv_count=1.0 / float(L))
        out3, bm, bv = pl.pallas_call(
            kernel,
            out_shape=out_shapes,
            grid_spec=pltpu.PrefetchScalarGridSpec(
                num_scalar_prefetch=0,
                grid=grid,
                in_specs=[
                    pl.BlockSpec((N, TC, HW), lambda c: (0, c, 0)),
                    pl.BlockSpec((TC, 1), lambda c: (c, 0)),
                    pl.BlockSpec((TC, 1), lambda c: (c, 0)),
                ],
                out_specs=(
                    pl.BlockSpec((N, TC, HW), lambda c: (0, c, 0)),
                    pl.BlockSpec((TC, 1), lambda c: (c, 0)),
                    pl.BlockSpec((TC, 1), lambda c: (c, 0)),
                ),
            ),
            compiler_params=_cparams(("parallel",)),
        )(x3, w2d, b2d)
    else:
        # ---------------- general fused two-phase path ----------------------
        TC = _channel_tile(C, c_align, 128)      # 128 keeps the VPU hot loop
        if HW <= 128:                            # within the 64-vreg budget
            TL = HW                              # full extent (always legal)
        elif HW % 128 == 0:
            TL = min(tl_cap, HW)
        else:
            TL = min(tl_cap, (HW // 128) * 128)  # 128-multiple, never > HW
        ACC_W = TL if TL < 128 else 128
        mask_lanes = (HW % TL) != 0              # ragged HW tail -> mask sums
        tn_cap = max(1, block_budget_bytes // max(1, TC * TL * itemsize))
        TN = _largest_divisor_leq(N, min(tn_cap, 128))   # amortize small HW

        grid = (pl.cdiv(C, TC), 2, N // TN, pl.cdiv(HW, TL))
        kernel = functools.partial(
            _bn_twophase_kernel, eps=float(eps), inv_count=1.0 / float(L),
            hw=HW, tl=TL, acc_w=ACC_W, tn=TN, mask_lanes=mask_lanes)

        out3, bm, bv = pl.pallas_call(
            kernel,
            out_shape=out_shapes,
            grid_spec=pltpu.PrefetchScalarGridSpec(
                num_scalar_prefetch=0,
                grid=grid,
                in_specs=[
                    pl.BlockSpec((TN, TC, TL), lambda c, p, n, l: (n, c, l)),
                    pl.BlockSpec((TC, 1), lambda c, p, n, l: (c, 0)),
                    pl.BlockSpec((TC, 1), lambda c, p, n, l: (c, 0)),
                ],
                out_specs=(
                    # Parked on block (0, c, 0) during phase 0 (never written
                    # there, so stale VMEM is never flushed); phase 1 writes
                    # every (n, c, l) block exactly once.
                    pl.BlockSpec((TN, TC, TL),
                                 lambda c, p, n, l: (n * p, c, l * p)),
                    pl.BlockSpec((TC, 1), lambda c, p, n, l: (c, 0)),
                    pl.BlockSpec((TC, 1), lambda c, p, n, l: (c, 0)),
                ),
                scratch_shapes=[
                    pltpu.VMEM((TC, ACC_W), jnp.float32),   # partial sums
                    pltpu.VMEM((TC, ACC_W), jnp.float32),   # partial sum-sq
                    pltpu.VMEM((TC, 1), jnp.float32),       # scale
                    pltpu.VMEM((TC, 1), jnp.float32),       # shift
                ],
            ),
            compiler_params=_cparams(
                ("parallel", "arbitrary", "arbitrary", "arbitrary")),
        )(x3, w2d, b2d)

    out = out3.reshape(N, C, H, W)

    # Running-stat update (PyTorch stores the *unbiased* batch variance).
    bm = bm.reshape(C)
    bv = bv.reshape(C)
    bessel = L / (L - 1) if L > 1 else 1.0
    new_running_mean = (1.0 - momentum) * running_mean + momentum * bm
    new_running_var = (1.0 - momentum) * running_var + momentum * (bv * bessel)

    # TODO(synk): eval-mode path (normalize with running stats), momentum=None
    # (1/num_batches_tracked) and the tuple-input `(x, kl)` branch (same BN on
    # x, kl=0) are host-side bookkeeping handled by the caller, not in-kernel.
    return out, new_running_mean, new_running_var


# --------------------------------------------------------------------------
# self-test
# --------------------------------------------------------------------------
def _reference(x, weight, bias, running_mean, running_var, eps, momentum):
    N, C, H, W = x.shape
    L = N * H * W
    mean = jnp.mean(x, axis=(0, 2, 3))
    var = jnp.mean((x - mean.reshape(1, C, 1, 1)) ** 2, axis=(0, 2, 3))
    out = (x - mean.reshape(1, C, 1, 1)) / jnp.sqrt(var.reshape(1, C, 1, 1) + eps)
    out = out * weight.reshape(1, C, 1, 1) + bias.reshape(1, C, 1, 1)
    bessel = L / (L - 1) if L > 1 else 1.0
    rm = (1.0 - momentum) * running_mean + momentum * mean
    rv = (1.0 - momentum) * running_var + momentum * (var * bessel)
    return out, rm, rv


if __name__ == "__main__":
    key = jax.random.PRNGKey(0)

    configs = [
        ("fast",    (2, 4, 16, 16)),    # primary small shape, single-read path
        ("twopass", (2, 4, 16, 16)),    # same data through the two-phase path
        ("fast",    (2, 12, 13, 13)),   # ragged C and HW, fast path
        ("twopass", (2, 12, 13, 13)),   # ragged C/HW, cdiv grid + lane masking
    ]

    for idx, (path, (N, C, H, W)) in enumerate(configs):
        kx, kw = jax.random.split(jax.random.fold_in(key, idx))
        x = jax.random.normal(kx, (N, C, H, W), dtype=jnp.float32)
        # reset_parameters(): weight ~ uniform_(), bias = 0, rm = 0, rv = 1.
        weight = jax.random.uniform(kw, (C,), dtype=jnp.float32)
        bias = jnp.zeros((C,), dtype=jnp.float32)
        running_mean = jnp.zeros((C,), dtype=jnp.float32)
        running_var = jnp.ones((C,), dtype=jnp.float32)

        out, nrm, nrv = batchnorm2d_forward(
            x, weight, bias, running_mean, running_var,
            eps=1e-5, momentum=0.1, path=path)
        jax.block_until_ready((out, nrm, nrv))

        ref_out, ref_rm, ref_rv = _reference(
            x, weight, bias, running_mean, running_var, 1e-5, 0.1)

        assert jnp.allclose(out, ref_out, atol=1e-4, rtol=1e-4), (
            path, (N, C, H, W), float(jnp.max(jnp.abs(out - ref_out))))
        assert jnp.allclose(nrm, ref_rm, atol=1e-4, rtol=1e-4), (path, "rm")
        assert jnp.allclose(nrv, ref_rv, atol=1e-4, rtol=1e-4), (path, "rv")

    print("KERNEL_OK")
</pallas_src>

<mosaic_0001>
module attributes {stable_mosaic.version = 11 : i64} {
  func.func @_bn_onepass_kernel(%arg0: i32, %arg1: memref<2x4x256xf32, #tpu.memory_space<vmem>>, %arg2: memref<4x1xf32, #tpu.memory_space<vmem>>, %arg3: memref<4x1xf32, #tpu.memory_space<vmem>>, %arg4: memref<2x4x256xf32, #tpu.memory_space<vmem>>, %arg5: memref<4x1xf32, #tpu.memory_space<vmem>>, %arg6: memref<4x1xf32, #tpu.memory_space<vmem>>) attributes {dimension_semantics = [#tpu.dimension_semantics<parallel>], iteration_bounds = array<i64: 1>, scalar_prefetch = 0 : i64, scratch_operands = 0 : i64, tpu.core_type = #tpu.core_type<tc>, window_params = [{transform_indices = @transform_0, window_bounds = array<i64: 2, 4, 256>}, {transform_indices = @transform_1, window_bounds = array<i64: 4, 1>}, {transform_indices = @transform_2, window_bounds = array<i64: 4, 1>}, {transform_indices = @transform_3, window_bounds = array<i64: 2, 4, 256>}, {transform_indices = @transform_4, window_bounds = array<i64: 4, 1>}, {transform_indices = @transform_5, window_bounds = array<i64: 4, 1>}]} {
    %c0 = arith.constant 0 : index
    %c0_0 = arith.constant 0 : index
    %c0_1 = arith.constant 0 : index
    %0 = vector.load %arg1[%c0, %c0_0, %c0_1] : memref<2x4x256xf32, #tpu.memory_space<vmem>>, vector<2x4x256xf32>
    %cst = arith.constant dense<0.000000e+00> : vector<4x256xf32>
    %1 = vector.multi_reduction <add>, %0, %cst [0] : vector<2x4x256xf32> to vector<4x256xf32>
    %2 = arith.mulf %0, %0 : vector<2x4x256xf32>
    %cst_2 = arith.constant dense<0.000000e+00> : vector<4x256xf32>
    %3 = vector.multi_reduction <add>, %2, %cst_2 [0] : vector<2x4x256xf32> to vector<4x256xf32>
    %cst_3 = arith.constant dense<0.000000e+00> : vector<4xf32>
    %4 = vector.multi_reduction <add>, %1, %cst_3 [1] : vector<4x256xf32> to vector<4xf32>
    %5 = vector.shape_cast %4 : vector<4xf32> to vector<4x1xf32>
    %cst_4 = arith.constant 0.001953125 : f32
    %6 = vector.broadcast %cst_4 : f32 to vector<4x1xf32>
    %7 = arith.mulf %5, %6 : vector<4x1xf32>
    %cst_5 = arith.constant dense<0.000000e+00> : vector<4xf32>
    %8 = vector.multi_reduction <add>, %3, %cst_5 [1] : vector<4x256xf32> to vector<4xf32>
    %9 = vector.shape_cast %8 : vector<4xf32> to vector<4x1xf32>
    %cst_6 = arith.constant 0.001953125 : f32
    %10 = vector.broadcast %cst_6 : f32 to vector<4x1xf32>
    %11 = arith.mulf %9, %10 : vector<4x1xf32>
    %12 = arith.mulf %7, %7 : vector<4x1xf32>
    %13 = arith.subf %11, %12 : vector<4x1xf32>
    %cst_7 = arith.constant 0.000000e+00 : f32
    %14 = vector.broadcast %cst_7 : f32 to vector<4x1xf32>
    %15 = arith.maximumf %13, %14 : vector<4x1xf32>
    %cst_8 = arith.constant 9.99999974E-6 : f32
    %16 = vector.broadcast %cst_8 : f32 to vector<4x1xf32>
    %17 = arith.addf %15, %16 : vector<4x1xf32>
    %18 = math.rsqrt %17 : vector<4x1xf32>
    %c0_9 = arith.constant 0 : index
    %c0_10 = arith.constant 0 : index
    %19 = vector.load %arg2[%c0_9, %c0_10] : memref<4x1xf32, #tpu.memory_space<vmem>>, vector<4x1xf32>
    %20 = arith.mulf %19, %18 : vector<4x1xf32>
    %c0_11 = arith.constant 0 : index
    %c0_12 = arith.constant 0 : index
    %21 = vector.load %arg3[%c0_11, %c0_12] : memref<4x1xf32, #tpu.memory_space<vmem>>, vector<4x1xf32>
    %22 = arith.mulf %7, %20 : vector<4x1xf32>
    %23 = arith.subf %21, %22 : vector<4x1xf32>
    %24 = vector.shape_cast %20 : vector<4x1xf32> to vector<1x4x1xf32>
    %25 = vector.broadcast %24 : vector<1x4x1xf32> to vector<2x4x256xf32>
    %26 = arith.mulf %0, %25 : vector<2x4x256xf32>
    %27 = vector.shape_cast %23 : vector<4x1xf32> to vector<1x4x1xf32>
    %28 = vector.broadcast %27 : vector<1x4x1xf32> to vector<2x4x256xf32>
    %29 = arith.addf %26, %28 : vector<2x4x256xf32>
    %c0_13 = arith.constant 0 : index
    %c0_14 = arith.constant 0 : index
    %c0_15 = arith.constant 0 : index
    %30 = vector.load %arg4[%c0_13, %c0_14, %c0_15] : memref<2x4x256xf32, #tpu.memory_space<vmem>>, vector<2x4x256xf32>
    tpu.vector_store %arg4[%c0_13, %c0_14, %c0_15], %29 {strides = array<i32>} : memref<2x4x256xf32, #tpu.memory_space<vmem>>, vector<2x4x256xf32>,
    %c0_16 = arith.constant 0 : index
    %c0_17 = arith.constant 0 : index
    %31 = vector.load %arg5[%c0_16, %c0_17] : memref<4x1xf32, #tpu.memory_space<vmem>>, vector<4x1xf32>
    tpu.vector_store %arg5[%c0_16, %c0_17], %7 {strides = array<i32>} : memref<4x1xf32, #tpu.memory_space<vmem>>, vector<4x1xf32>,
    %c0_18 = arith.constant 0 : index
    %c0_19 = arith.constant 0 : index
    %32 = vector.load %arg6[%c0_18, %c0_19] : memref<4x1xf32, #tpu.memory_space<vmem>>, vector<4x1xf32>
    tpu.vector_store %arg6[%c0_18, %c0_19], %15 {strides = array<i32>} : memref<4x1xf32, #tpu.memory_space<vmem>>, vector<4x1xf32>,
    return
  }
  func.func @transform_0(%arg0: i32) -> (i32, i32, i32) {
    %c0_i32 = arith.constant 0 : i32
    %c0_i32_0 = arith.constant 0 : i32
    %c0_i32_1 = arith.constant 0 : i32
    return %c0_i32, %arg0, %c0_i32_0 : i32, i32, i32
  }
  func.func @transform_1(%arg0: i32) -> (i32, i32) {
    %c0_i32 = arith.constant 0 : i32
    %c0_i32_0 = arith.constant 0 : i32
    return %arg0, %c0_i32 : i32, i32
  }
  func.func @transform_2(%arg0: i32) -> (i32, i32) {
    %c0_i32 = arith.constant 0 : i32
    %c0_i32_0 = arith.constant 0 : i32
    return %arg0, %c0_i32 : i32, i32
  }
  func.func @transform_3(%arg0: i32) -> (i32, i32, i32) {
    %c0_i32 = arith.constant 0 : i32
    %c0_i32_0 = arith.constant 0 : i32
    %c0_i32_1 = arith.constant 0 : i32
    return %c0_i32, %arg0, %c0_i32_0 : i32, i32, i32
  }
  func.func @transform_4(%arg0: i32) -> (i32, i32) {
    %c0_i32 = arith.constant 0 : i32
    %c0_i32_0 = arith.constant 0 : i32
    return %arg0, %c0_i32 : i32, i32
  }
  func.func @transform_5(%arg0: i32) -> (i32, i32) {
    %c0_i32 = arith.constant 0 : i32
    %c0_i32_0 = arith.constant 0 : i32
    return %arg0, %c0_i32 : i32, i32
  }
}

</mosaic_0001>

<llo_original>
// kernel: tpu_custom_call.1
$region0: #{tpu_custom_call.1}
  #allocation0 [shape = 'u32[]', space=smem, size = 0x4, offset = 0x4, fixed_abs, tag = 'smem constant byte address 0x4 - core index']
  #allocation1 [shape = 'u32[72,128]{1,0:T(1,128)}', space=vmem, size = 0x9000, scoped, tag = 'internal scratch']
  %s0 = inlined_call_operand.hbm [shape: f32[2,4,256], index: 0, kind: input, shape index: {}]
  %s1 = inlined_call_operand.vmem [shape: f32[4,1], index: 1, kind: input, shape index: {}]
  %s2 = inlined_call_operand.vmem [shape: f32[4,1], index: 2, kind: input, shape index: {}]
  %s3 = inlined_call_operand.hbm [shape: f32[2,4,256], index: 3, kind: output, shape index: {0}]
  %s4 = inlined_call_operand.vmem [shape: f32[4,1], index: 4, kind: output, shape index: {1}]
  %s5 = inlined_call_operand.vmem [shape: f32[4,1], index: 5, kind: output, shape index: {2}]
  %6 = xla_tuple %s3, %s4, %s5
  %s7 = sld [smem:[#allocation0]]
  $region42: #{tpu_custom_call.1} parent=0
    _
  %s9 = ssub.s32 1, %s7
  %s10 = scalar_select 0, %s9, %s7
  $region1: #{tpu_custom_call.1} parent=0
    #allocation2 [shape = 'u8[8192]{0}', space=vmem, size = 0x2000, scoped, tag = 'input window, operand 0, single buffered']
    #allocation3 [shape = 's32[1]{0}', space=sflag, size = 0x4, scoped, tag = 'scoped memory for tpu_custom_call.1']
    #allocation4 [shape = 's32[1]{0}', space=sflag, size = 0x4, scoped, tag = 'scoped memory for tpu_custom_call.1']
    #allocation5 [shape = 'u8[8192]{0}', space=vmem, size = 0x2000, scoped, tag = 'output window, operand 0, single buffered']
    %11 = vsyncpa [#allocation3], 0
    %12 = vsyncpa [#allocation4], 0
    // Predicated region
    $region2: #{tpu_custom_call.1} parent=1 // pred_check
      _
    $region3: #{tpu_custom_call.1} parent=1 // pred_check_branch
      %14 = sbr.rel (0) target = $region5
    $region4: #{tpu_custom_call.1} parent=1 // pred_region
      %16 = vsyncadd [#allocation3], 0
      %s17 = sshll.u32 %s0, 4
      %s18 = int_to_ptr.hbm [resolvable:$true] %s17
      %s19 = sshll.u32 [#allocation2], 4
      %s20 = int_to_ptr.vmem [resolvable:$true] %s19
      %25 = dma.hbm_to_vmem [thread:$0]  %s18, 256, %s20, [#allocation3], 128, 128, 8
    $region5: #{tpu_custom_call.1} parent=1 // pred_fallthru
      _
    // Predicated region
    $region6: #{tpu_custom_call.1} parent=1 // pred_check
      _
    $region7: #{tpu_custom_call.1} parent=1 // pred_check_branch
      %27 = sbr.rel (0) target = $region9
    $region8: #{tpu_custom_call.1} parent=1 // pred_region
      _
    $region9: #{tpu_custom_call.1} parent=1 // pred_fallthru
      _
    // Predicated region
    $region10: #{tpu_custom_call.1} parent=1 // pred_check
      _
    $region11: #{tpu_custom_call.1} parent=1 // pred_check_branch
      %29 = sbr.rel (0) target = $region13
    $region12: #{tpu_custom_call.1} parent=1 // pred_region
      _
    $region13: #{tpu_custom_call.1} parent=1 // pred_fallthru
      _
    // Predicated region
    $region14: #{tpu_custom_call.1} parent=1 // pred_check
      _
    $region15: #{tpu_custom_call.1} parent=1 // pred_check_branch
      %31 = sbr.rel (0) target = $region17
    $region16: #{tpu_custom_call.1} parent=1 // pred_region
      %33 = dma.done [#allocation3], 256
    $region17: #{tpu_custom_call.1} parent=1 // pred_fallthru
      _
    %v34 = vld [vmem:[#allocation2] sm:$0xff]
    %v35 = vld [vmem:[#allocation2 + $0x8] sm:$0xff]
    %38 = vst [vmem:[#allocation1] ss:$2 sm:$0xff] %v34
    %v39 = vld.sshfl [vmem:[#allocation1] sm:$0xff pattern:$0x75316420]
    %v40 = vld.sshfl [vmem:[#allocation1 + $0x8] sm:$0xff pattern:$0x75316420]
    %s41 = scalar_lea.vmem [#allocation1], 16
    %42 = vst [vmem:[%s41] ss:$2 sm:$0xff] %v35
    %v43 = vld.sshfl [vmem:[#allocation1 + $0x10] sm:$0xff pattern:$0x75316420]
    %v44 = vld.sshfl [vmem:[#allocation1 + $0x18] sm:$0xff pattern:$0x75316420]
    %vm49 = vcmask 1043456
    %v50 = vsel %vm49, %v39, 0.0
    %v51 = vsel %vm49, %v43, 0.0
    %v52 = vadd.f32 %v50, %v51
    %v53 = vsel %vm49, %v40, 0.0
    %v54 = vsel %vm49, %v44, 0.0
    %v55 = vadd.f32 %v53, %v54
    %v56 = vmul.f32 %v34, %v34
    %v57 = vmul.f32 %v35, %v35
    %60 = vst [vmem:[#allocation1] ss:$2 sm:$0xff] %v56
    %v61 = vld.sshfl [vmem:[#allocation1] sm:$0xff pattern:$0x75316420]
    %v62 = vld.sshfl [vmem:[#allocation1 + $0x8] sm:$0xff pattern:$0x75316420]
    %s63 = scalar_lea.vmem [#allocation1], 16
    %64 = vst [vmem:[%s63] ss:$2 sm:$0xff] %v57
    %v65 = vld.sshfl [vmem:[#allocation1 + $0x10] sm:$0xff pattern:$0x75316420]
    %v66 = vld.sshfl [vmem:[#allocation1 + $0x18] sm:$0xff pattern:$0x75316420]
    %v71 = vsel %vm49, %v61, 0.0
    %v72 = vsel %vm49, %v65, 0.0
    %v73 = vadd.f32 %v71, %v72
    %v74 = vsel %vm49, %v62, 0.0
    %v75 = vsel %vm49, %v66, 0.0
    %v76 = vadd.f32 %v74, %v75
    %v77 = vsel %vm49, %v52, 0.0
    %v78 = vsel %vm49, %v55, 0.0
    %v79 = vadd.f32 %v77, %v78
    %80 = vadd.xlane.f32.xlu0 %v79
    %v81 = vpop.xlane.xlu0 %80
    %v82 = vmul.f32 %v81, 0.001953125
    %v83 = vsel %vm49, %v73, 0.0
    %v84 = vsel %vm49, %v76, 0.0
    %v85 = vadd.f32 %v83, %v84
    %86 = vadd.xlane.f32.xlu0 %v85
    %v87 = vpop.xlane.xlu0 %86
    %v88 = vmul.f32 %v87, 0.001953125
    %v89 = vmul.f32 %v82, %v82
    %v90 = vsub.f32 %v88, %v89
    %v91 = vmax.f32 %v90, 0.0
    %v92 = vadd.f32 %v91, 1e-05
    %v93 = vrsqrt.pop %v92
    %v94 = vmul.f32 %v93, %v92
    %v95 = vmul.f32 %v94, %v93
    %v96 = vmul.f32 0.5, %v95
    %v97 = vsub.f32 1.5, %v96
    %v98 = vmul.f32 %v93, %v97
    %vm99 = vweird.f32 %v92
    %vm100 = vweird.f32 %v93
    %vm101 = vmor %vm99, %vm100
    %v102 = vsel %vm101, %v93, %v98
    %v103 = vld [vmem:[%s1] sm:$0xf]
    %v104 = vmul.f32 %v103, %v102
    %v105 = vld [vmem:[%s2] sm:$0xf]
    %v106 = vmul.f32 %v82, %v104
    %v107 = vsub.f32 %v105, %v106
    %109 = vset.pattern.permute.xlu0 0
    %110 = vperm.xlu0 %109, %v104
    %v111 = vpop.permute.xlu0 %110
    %v113 = vunpack.c.l.s4 839922192
    %v114 = vunpack.c.0.s8 %v113
    %v115 = vperm.slane %v111, %v114
    %v117 = vmul.f32 %v34, %v115
    %v118 = vmul.f32 %v35, %v115
    %120 = vset.pattern.permute.xlu0 0
    %121 = vperm.xlu0 %120, %v107
    %v122 = vpop.permute.xlu0 %121
    %v124 = vunpack.c.l.s4 839922192
    %v125 = vunpack.c.0.s8 %v124
    %v126 = vperm.slane %v122, %v125
    %v128 = vadd.f32 %v117, %v126
    %v129 = vadd.f32 %v118, %v126
    %130 = vst [vmem:[#allocation5] sm:$0xff] %v128
    %131 = vst [vmem:[#allocation5 + $0x8] sm:$0xff] %v129
    %vm132 = vcmask 3072
    %133 = vst.msk [vmem:[%s4] sm:$0xf] %vm132, %v82
    %134 = vst.msk [vmem:[%s5] sm:$0xf] %vm132, %v91
    // Predicated region
    $region18: #{tpu_custom_call.1} parent=1 // pred_check
      _
    $region19: #{tpu_custom_call.1} parent=1 // pred_check_branch
      %136 = sbr.rel (0) target = $region21
    $region20: #{tpu_custom_call.1} parent=1 // pred_region
      %138 = vsyncadd [#allocation4], 0
      %s139 = sshll.u32 [#allocation5], 4
      %s140 = int_to_ptr.vmem [resolvable:$true] %s139
      %s141 = sshll.u32 %s3, 4
      %s142 = int_to_ptr.hbm [resolvable:$true] %s141
      %147 = dma.vmem_to_hbm [thread:$0]  %s140, 256, %s142, [#allocation4], 128, 128, 8
    $region21: #{tpu_custom_call.1} parent=1 // pred_fallthru
      _
    // Predicated region
    $region22: #{tpu_custom_call.1} parent=1 // pred_check
      _
    $region23: #{tpu_custom_call.1} parent=1 // pred_check_branch
      %149 = sbr.rel (0) target = $region25
    $region24: #{tpu_custom_call.1} parent=1 // pred_region
      _
    $region25: #{tpu_custom_call.1} parent=1 // pred_fallthru
      _
    // Predicated region
    $region26: #{tpu_custom_call.1} parent=1 // pred_check
      _
    $region27: #{tpu_custom_call.1} parent=1 // pred_check_branch
      %151 = sbr.rel (0) target = $region29
    $region28: #{tpu_custom_call.1} parent=1 // pred_region
      _
    $region29: #{tpu_custom_call.1} parent=1 // pred_fallthru
      _
    // Predicated region
    $region30: #{tpu_custom_call.1} parent=1 // pred_check
      _
    $region31: #{tpu_custom_call.1} parent=1 // pred_check_branch
      %153 = sbr.rel (0) target = $region33
    $region32: #{tpu_custom_call.1} parent=1 // pred_region
      %155 = dma.done [#allocation4], 256
    $region33: #{tpu_custom_call.1} parent=1 // pred_fallthru
      _
    // Predicated region
    $region34: #{tpu_custom_call.1} parent=1 // pred_check
      _
    $region35: #{tpu_custom_call.1} parent=1 // pred_check_branch
      %157 = sbr.rel (0) target = $region37
    $region36: #{tpu_custom_call.1} parent=1 // pred_region
      _
    $region37: #{tpu_custom_call.1} parent=1 // pred_fallthru
      _
    // Predicated region
    $region38: #{tpu_custom_call.1} parent=1 // pred_check
      _
    $region39: #{tpu_custom_call.1} parent=1 // pred_check_branch
      %159 = sbr.rel (0) target = $region41
    $region40: #{tpu_custom_call.1} parent=1 // pred_region
      _
    $region41: #{tpu_custom_call.1} parent=1 // pred_fallthru
      _
    %160 = vsyncpa [#allocation3], 1
    %161 = vsyncpa [#allocation4], 1

</llo_original>
